<compile_context>
chip_gen: v5e
topology: v5e:2x2
jax: 0.10.0
libtpu: 0.0.40
codegen_flags: <defaults>
</compile_context>

<pallas_src>
import jax
import jax.numpy as jnp
from jax import lax
from jax.experimental import pallas as pl
from jax.experimental.pallas import tpu as pltpu


_INV_SQRT2 = 0.7071067811865476  # 1/sqrt(2), hoisted constant


def _gelu_exact_f32(x):
    # GELU(approximate='none'): 0.5 * x * (1 + erf(x / sqrt(2))), x is f32.
    return 0.5 * x * (1.0 + lax.erf(x * _INV_SQRT2))


# ---------------------------------------------------------------------------
# Kernels
# ---------------------------------------------------------------------------

def _mlp_kernel_acc_out(x_ref, w_fc_ref, b_fc_ref, w_proj_ref, b_proj_ref, o_ref):
    """f32 output: accumulate directly into o_ref (no scratch, no epilogue copy)."""
    j = pl.program_id(1)

    @pl.when(j == 0)
    def _init():
        o_ref[...] = jnp.broadcast_to(
            b_proj_ref[...].astype(jnp.float32), o_ref.shape)

    # (tm, C) @ (C, th) -> (tm, th), f32 accumulation on the MXU.
    h = jnp.dot(x_ref[...], w_fc_ref[...], preferred_element_type=jnp.float32)
    h = _gelu_exact_f32(h + b_fc_ref[...].astype(jnp.float32))

    # (tm, th) @ (th, C) accumulated straight into the resident f32 output tile.
    o_ref[...] += jnp.dot(h.astype(w_proj_ref.dtype), w_proj_ref[...],
                          preferred_element_type=jnp.float32)


def _mlp_kernel_scratch(x_ref, w_fc_ref, b_fc_ref, w_proj_ref, b_proj_ref,
                        o_ref, acc_ref):
    """Non-f32 output: f32 VMEM accumulator, cast/store on the last H chunk."""
    j = pl.program_id(1)

    @pl.when(j == 0)
    def _init():
        acc_ref[...] = jnp.broadcast_to(
            b_proj_ref[...].astype(jnp.float32), acc_ref.shape)

    h = jnp.dot(x_ref[...], w_fc_ref[...], preferred_element_type=jnp.float32)
    h = _gelu_exact_f32(h + b_fc_ref[...].astype(jnp.float32))
    acc_ref[...] += jnp.dot(h.astype(w_proj_ref.dtype), w_proj_ref[...],
                            preferred_element_type=jnp.float32)

    @pl.when(j == pl.num_programs(1) - 1)
    def _finalize():
        o_ref[...] = acc_ref[...].astype(o_ref.dtype)


# ---------------------------------------------------------------------------
# Tile / VMEM planning
# ---------------------------------------------------------------------------

def _round_up(v, m):
    return ((v + m - 1) // m) * m


def _tpu_info():
    try:
        cap = int(pltpu.get_tpu_info().vmem_capacity_bytes)
    except Exception:
        cap = 64 * 1024 * 1024  # conservative (v7x per-TC) fallback
    try:
        kind = jax.devices()[0].device_kind.lower()
    except Exception:
        kind = ""
    return cap, kind


def _default_tm(cap, kind):
    # tm sets flops per streamed weight byte (~tm for bf16).  Break-even:
    # v6e ~650-720, v7x ~310, v5e ~240 flops/byte.
    if "v7" in kind or cap <= 64 * 1024 * 1024:
        return 512            # v7x: compute-bound already; 64 MiB VMEM per TC
    if "v6" in kind:
        return 1024           # v6e: 918 TF/s vs ~1.4 TB/s -> needs a big tile
    return 512                # v5e & unknown: comfortable margin, huge VMEM


def _pick_th(H):
    """Prefer a multiple of 256 that divides H (MXU-friendly), targeting 512."""
    if H <= 512:
        return H
    if H % 256 == 0:
        step = 256
    elif H % 128 == 0:
        step = 128
    else:
        return H  # no clean chunking; stream the whole hidden dim
    divs = [t for t in range(step, H + 1, step) if H % t == 0]
    if 512 in divs:
        return 512
    smaller = [t for t in divs if t < 512]
    return max(smaller) if smaller else min(divs)


def _footprint_bytes(tm, th, C, x_isz, w_isz, out_isz, use_acc):
    f = 0
    f += 2 * tm * C * x_isz            # x tile, double-buffered
    f += 2 * tm * C * out_isz          # out tile, double-buffered
    if use_acc:
        f += tm * C * 4                # f32 accumulator scratch
    f += 2 * (C * th + th * C) * w_isz # streamed weight chunks, double-buffered
    f += 2 * (th + C) * 4              # biases (small)
    f += tm * th * (4 + w_isz)         # h in f32 + cast copy for matmul 2
    return f


# ---------------------------------------------------------------------------
# Wrapper
# ---------------------------------------------------------------------------

def mlp_pallas(x, w_fc, b_fc, w_proj, b_proj, *, tm=None, th=None,
               compute_dtype=None):
    """x: (B, T, C). w_fc: (C, 4C), b_fc: (4C,), w_proj: (4C, C), b_proj: (C,).

    compute_dtype: optional dtype (e.g. jnp.bfloat16) for x/weights inside the
    kernel; accumulation stays f32 and the output keeps x's original dtype.
    """
    B, T, C = x.shape
    H = w_fc.shape[1]
    M = B * T
    out_dtype = x.dtype

    if compute_dtype is not None:
        x = x.astype(compute_dtype)
        w_fc = w_fc.astype(compute_dtype)
        w_proj = w_proj.astype(compute_dtype)

    x2 = x.reshape(M, C)
    b_fc2 = b_fc.reshape(1, H)
    b_proj2 = b_proj.reshape(1, C)

    cap, kind = _tpu_info()
    is_v7 = ("v7" in kind) or (cap <= 64 * 1024 * 1024)

    # --- H chunk: multiple of 256 (preferred) / 128 dividing H, else full H ---
    if th is None or th >= H or th <= 0 or H % th != 0 or th % 128 != 0:
        th = _pick_th(H)

    # --- M tile: generation-specific default, 16-aligned ---
    if tm is None:
        tm = _default_tm(cap, kind)
    if is_v7 and M >= 512:
        # Keep >= 2 M-tiles so both TensorCores get work on the "parallel" axis.
        tm = min(tm, _round_up((M + 1) // 2, 16))
    if tm >= M:
        tm = M                       # block == full dim is always legal
    else:
        tm = max(16, (tm // 16) * 16)

    use_acc = jnp.dtype(out_dtype) != jnp.dtype(jnp.float32)
    x_isz = jnp.dtype(x2.dtype).itemsize
    w_isz = jnp.dtype(w_fc.dtype).itemsize
    out_isz = jnp.dtype(out_dtype).itemsize

    # --- shrink tiles until the estimated footprint fits the VMEM budget ---
    budget = int(cap * 0.70)

    def est(tm_, th_):
        return _footprint_bytes(tm_, th_, C, x_isz, w_isz, out_isz, use_acc)

    while tm > 128 and tm < M and est(tm, th) > budget:
        tm = max(128, ((tm // 2) // 16) * 16)
    if est(tm, th) > budget:
        for step in (256, 128):
            if H % step == 0:
                th = step
                break

    n_h = H // th
    grid = (pl.cdiv(M, tm), n_h)

    # Serpentine over H: reverse the chunk order on odd M-tiles so the last
    # weight chunk of tile i equals the first chunk of tile i+1 (DMA skipped).
    def _serp(i, j):
        return j + (i % 2) * (n_h - 1 - 2 * j)

    in_specs = [
        pl.BlockSpec((tm, C), lambda i, j: (i, 0)),        # x tile (resident over H)
        pl.BlockSpec((C, th), lambda i, j: (0, _serp(i, j))),   # w_fc chunk
        pl.BlockSpec((1, th), lambda i, j: (0, _serp(i, j))),   # b_fc chunk
        pl.BlockSpec((th, C), lambda i, j: (_serp(i, j), 0)),   # w_proj chunk
        pl.BlockSpec((1, C), lambda i, j: (0, 0)),         # b_proj (resident)
    ]
    out_spec = pl.BlockSpec((tm, C), lambda i, j: (i, 0))

    if use_acc:
        kernel = _mlp_kernel_scratch
        scratch_shapes = [pltpu.VMEM((tm, C), jnp.float32)]
    else:
        kernel = _mlp_kernel_acc_out
        scratch_shapes = []

    vmem_limit = max(32 * 1024 * 1024,
                     min(int(cap * 0.85), est(tm, th) + 16 * 1024 * 1024))

    out2 = pl.pallas_call(
        kernel,
        out_shape=jax.ShapeDtypeStruct((M, C), out_dtype),
        grid_spec=pltpu.PrefetchScalarGridSpec(
            num_scalar_prefetch=0,
            grid=grid,
            in_specs=in_specs,
            out_specs=out_spec,
            scratch_shapes=scratch_shapes,
        ),
        compiler_params=pltpu.CompilerParams(
            dimension_semantics=("parallel", "arbitrary"),
            vmem_limit_bytes=vmem_limit,
        ),
    )(x2, w_fc, b_fc2, w_proj, b_proj2)
    return out2.reshape(B, T, C)


# ---------------------------------------------------------------------------
# Params / reference / demo
# ---------------------------------------------------------------------------

def init_mlp_params(key, n_embd, dtype=jnp.float32):
    """Deterministic init matching nn.Linear shapes (stored pre-transposed)."""
    k1, k2, k3, k4 = jax.random.split(key, 4)
    hidden = 4 * n_embd
    lim_fc = 1.0 / jnp.sqrt(n_embd)
    lim_proj = 1.0 / jnp.sqrt(hidden)
    w_fc = jax.random.uniform(k1, (n_embd, hidden), dtype, -lim_fc, lim_fc)
    b_fc = jax.random.uniform(k2, (hidden,), dtype, -lim_fc, lim_fc)
    w_proj = jax.random.uniform(k3, (hidden, n_embd), dtype, -lim_proj, lim_proj)
    b_proj = jax.random.uniform(k4, (n_embd,), dtype, -lim_proj, lim_proj)
    return w_fc, b_fc, w_proj, b_proj


def mlp_reference(x, w_fc, b_fc, w_proj, b_proj):
    h = x @ w_fc + b_fc
    h = 0.5 * h * (1.0 + lax.erf(h * _INV_SQRT2))
    return h @ w_proj + b_proj


if __name__ == "__main__":
    key = jax.random.PRNGKey(0)

    # --- small demo shapes (matches the module: n_embd=32 -> hidden=128) ---
    B, T, C = 2, 8, 32
    kx, kp = jax.random.split(key)
    x = jax.random.normal(kx, (B, T, C), jnp.float32)
    w_fc, b_fc, w_proj, b_proj = init_mlp_params(kp, C)

    out = jax.block_until_ready(mlp_pallas(x, w_fc, b_fc, w_proj, b_proj))
    ref = mlp_reference(x, w_fc, b_fc, w_proj, b_proj)
    assert out.shape == (B, T, C)
    assert jnp.allclose(out, ref, atol=1e-5, rtol=1e-5), "mismatch (small)"

    # --- exercises M- and H-tiling + accumulation + serpentine (all f32) ---
    B2, T2, C2 = 4, 128, 256        # M=512 (>=2 M-tiles), H=1024 (2 chunks of 512)
    kx2, kp2 = jax.random.split(jax.random.PRNGKey(1))
    x2 = jax.random.normal(kx2, (B2, T2, C2), jnp.float32)
    p2 = init_mlp_params(kp2, C2)
    out2 = jax.block_until_ready(mlp_pallas(x2, *p2))
    ref2 = mlp_reference(x2, *p2)
    assert jnp.allclose(out2, ref2, atol=1e-3, rtol=1e-3), "mismatch (tiled)"

    # --- bf16 compute path (fast MXU path on v6e/v7x), f32 output dtype kept ---
    out3 = jax.block_until_ready(
        mlp_pallas(x2, *p2, compute_dtype=jnp.bfloat16))
    assert out3.dtype == x2.dtype
    assert jnp.allclose(out3, ref2, atol=1e-1, rtol=1e-1), "mismatch (bf16)"

    print("KERNEL_OK")
</pallas_src>

<mosaic_0001>
module attributes {stable_mosaic.version = 11 : i64} {
  func.func @_mlp_kernel_acc_out(%arg0: i32, %arg1: i32, %arg2: memref<16x32xf32, #tpu.memory_space<vmem>>, %arg3: memref<32x128xf32, #tpu.memory_space<vmem>>, %arg4: memref<1x128xf32, #tpu.memory_space<vmem>>, %arg5: memref<128x32xf32, #tpu.memory_space<vmem>>, %arg6: memref<1x32xf32, #tpu.memory_space<vmem>>, %arg7: memref<16x32xf32, #tpu.memory_space<vmem>>) attributes {dimension_semantics = [#tpu.dimension_semantics<parallel>, #tpu.dimension_semantics<arbitrary>], iteration_bounds = array<i64: 1, 1>, scalar_prefetch = 0 : i64, scratch_operands = 0 : i64, tpu.core_type = #tpu.core_type<tc>, window_params = [{transform_indices = @transform_0, window_bounds = array<i64: 16, 32>}, {transform_indices = @transform_1, window_bounds = array<i64: 32, 128>}, {transform_indices = @transform_2, window_bounds = array<i64: 1, 128>}, {transform_indices = @transform_3, window_bounds = array<i64: 128, 32>}, {pipeline_mode = #tpu.pipeline_mode<synchronous>, transform_indices = @transform_4, window_bounds = array<i64: 1, 32>}, {transform_indices = @transform_5, window_bounds = array<i64: 16, 32>}]} {
    %c0_i32 = arith.constant 0 : i32
    %0 = arith.cmpi eq, %arg1, %c0_i32 : i32
    %1 = arith.extui %0 : i1 to i32
    %c0_i32_0 = arith.constant 0 : i32
    %2 = arith.cmpi ne, %1, %c0_i32_0 : i32
    scf.if %2 {
      %c0_16 = arith.constant 0 : index
      %c0_17 = arith.constant 0 : index
      %22 = vector.load %arg6[%c0_16, %c0_17] : memref<1x32xf32, #tpu.memory_space<vmem>>, vector<1x32xf32>
      %23 = vector.shape_cast %22 : vector<1x32xf32> to vector<1x32xf32>
      %24 = vector.broadcast %23 : vector<1x32xf32> to vector<16x32xf32>
      %c0_18 = arith.constant 0 : index
      %c0_19 = arith.constant 0 : index
      %25 = vector.load %arg7[%c0_18, %c0_19] : memref<16x32xf32, #tpu.memory_space<vmem>>, vector<16x32xf32>
      tpu.vector_store %arg7[%c0_18, %c0_19], %24 {strides = array<i32>} : memref<16x32xf32, #tpu.memory_space<vmem>>, vector<16x32xf32>,
    } else {
    }
    %c0 = arith.constant 0 : index
    %c0_1 = arith.constant 0 : index
    %3 = vector.load %arg2[%c0, %c0_1] : memref<16x32xf32, #tpu.memory_space<vmem>>, vector<16x32xf32>
    %c0_2 = arith.constant 0 : index
    %c0_3 = arith.constant 0 : index
    %4 = vector.load %arg3[%c0_2, %c0_3] : memref<32x128xf32, #tpu.memory_space<vmem>>, vector<32x128xf32>
    %cst = arith.constant dense<0.000000e+00> : vector<16x128xf32>
    %5 = tpu.matmul %3, %4, %cst {dimension_numbers = #tpu.dot_dimension_numbers<[1], [0], [0], [1], [0, 0, 1, 1], [], []>} : vector<16x32xf32>, vector<32x128xf32>, vector<16x128xf32> -> vector<16x128xf32>
    %c0_4 = arith.constant 0 : index
    %c0_5 = arith.constant 0 : index
    %6 = vector.load %arg4[%c0_4, %c0_5] : memref<1x128xf32, #tpu.memory_space<vmem>>, vector<1x128xf32>
    %7 = vector.broadcast %6 : vector<1x128xf32> to vector<16x128xf32>
    %8 = arith.addf %5, %7 : vector<16x128xf32>
    %cst_6 = arith.constant 5.000000e-01 : f32
    %9 = vector.broadcast %cst_6 : f32 to vector<16x128xf32>
    %10 = arith.mulf %9, %8 : vector<16x128xf32>
    %cst_7 = arith.constant 0.707106769 : f32
    %11 = vector.broadcast %cst_7 : f32 to vector<16x128xf32>
    %12 = arith.mulf %8, %11 : vector<16x128xf32>
    %13 = math.erf %12 : vector<16x128xf32>
    %cst_8 = arith.constant 1.000000e+00 : f32
    %14 = vector.broadcast %cst_8 : f32 to vector<16x128xf32>
    %15 = arith.addf %14, %13 : vector<16x128xf32>
    %16 = arith.mulf %10, %15 : vector<16x128xf32>
    %c0_9 = arith.constant 0 : index
    %c0_10 = arith.constant 0 : index
    %17 = vector.load %arg7[%c0_9, %c0_10] : memref<16x32xf32, #tpu.memory_space<vmem>>, vector<16x32xf32>
    %c0_11 = arith.constant 0 : index
    %c0_12 = arith.constant 0 : index
    %18 = vector.load %arg5[%c0_11, %c0_12] : memref<128x32xf32, #tpu.memory_space<vmem>>, vector<128x32xf32>
    %cst_13 = arith.constant dense<0.000000e+00> : vector<16x32xf32>
    %19 = tpu.matmul %16, %18, %cst_13 {dimension_numbers = #tpu.dot_dimension_numbers<[1], [0], [0], [1], [0, 0, 1, 1], [], []>} : vector<16x128xf32>, vector<128x32xf32>, vector<16x32xf32> -> vector<16x32xf32>
    %20 = arith.addf %17, %19 : vector<16x32xf32>
    %c0_14 = arith.constant 0 : index
    %c0_15 = arith.constant 0 : index
    %21 = vector.load %arg7[%c0_14, %c0_15] : memref<16x32xf32, #tpu.memory_space<vmem>>, vector<16x32xf32>
    tpu.vector_store %arg7[%c0_14, %c0_15], %20 {strides = array<i32>} : memref<16x32xf32, #tpu.memory_space<vmem>>, vector<16x32xf32>,
    return
  }
  func.func @transform_0(%arg0: i32, %arg1: i32) -> (i32, i32) {
    %c0_i32 = arith.constant 0 : i32
    %c0_i32_0 = arith.constant 0 : i32
    return %arg0, %c0_i32 : i32, i32
  }
  func.func @transform_1(%arg0: i32, %arg1: i32) -> (i32, i32) {
    %c2_i32 = arith.constant 2 : i32
    %c0_i32 = arith.constant 0 : i32
    %0 = arith.cmpi eq, %c2_i32, %c0_i32 : i32
    %c1_i32 = arith.constant 1 : i32
    %1 = arith.select %0, %c1_i32, %c2_i32 : i32
    %2 = arith.remsi %arg0, %1 : i32
    %c0_i32_0 = arith.constant 0 : i32
    %3 = arith.cmpi ne, %2, %c0_i32_0 : i32
    %c0_i32_1 = arith.constant 0 : i32
    %4 = arith.cmpi slt, %2, %c0_i32_1 : i32
    %c0_i32_2 = arith.constant 0 : i32
    %5 = arith.cmpi slt, %1, %c0_i32_2 : i32
    %6 = arith.xori %4, %5 : i1
    %7 = arith.andi %6, %3 : i1
    %8 = arith.addi %2, %1 : i32
    %9 = arith.select %7, %8, %2 : i32
    %c2_i32_3 = arith.constant 2 : i32
    %10 = arith.muli %c2_i32_3, %arg1 : i32
    %c0_i32_4 = arith.constant 0 : i32
    %11 = arith.subi %c0_i32_4, %10 : i32
    %12 = arith.muli %9, %11 : i32
    %13 = arith.addi %arg1, %12 : i32
    %c0_i32_5 = arith.constant 0 : i32
    %c0_i32_6 = arith.constant 0 : i32
    return %c0_i32_5, %13 : i32, i32
  }
  func.func @transform_2(%arg0: i32, %arg1: i32) -> (i32, i32) {
    %c2_i32 = arith.constant 2 : i32
    %c0_i32 = arith.constant 0 : i32
    %0 = arith.cmpi eq, %c2_i32, %c0_i32 : i32
    %c1_i32 = arith.constant 1 : i32
    %1 = arith.select %0, %c1_i32, %c2_i32 : i32
    %2 = arith.remsi %arg0, %1 : i32
    %c0_i32_0 = arith.constant 0 : i32
    %3 = arith.cmpi ne, %2, %c0_i32_0 : i32
    %c0_i32_1 = arith.constant 0 : i32
    %4 = arith.cmpi slt, %2, %c0_i32_1 : i32
    %c0_i32_2 = arith.constant 0 : i32
    %5 = arith.cmpi slt, %1, %c0_i32_2 : i32
    %6 = arith.xori %4, %5 : i1
    %7 = arith.andi %6, %3 : i1
    %8 = arith.addi %2, %1 : i32
    %9 = arith.select %7, %8, %2 : i32
    %c2_i32_3 = arith.constant 2 : i32
    %10 = arith.muli %c2_i32_3, %arg1 : i32
    %c0_i32_4 = arith.constant 0 : i32
    %11 = arith.subi %c0_i32_4, %10 : i32
    %12 = arith.muli %9, %11 : i32
    %13 = arith.addi %arg1, %12 : i32
    %c0_i32_5 = arith.constant 0 : i32
    %c0_i32_6 = arith.constant 0 : i32
    return %c0_i32_5, %13 : i32, i32
  }
  func.func @transform_3(%arg0: i32, %arg1: i32) -> (i32, i32) {
    %c2_i32 = arith.constant 2 : i32
    %c0_i32 = arith.constant 0 : i32
    %0 = arith.cmpi eq, %c2_i32, %c0_i32 : i32
    %c1_i32 = arith.constant 1 : i32
    %1 = arith.select %0, %c1_i32, %c2_i32 : i32
    %2 = arith.remsi %arg0, %1 : i32
    %c0_i32_0 = arith.constant 0 : i32
    %3 = arith.cmpi ne, %2, %c0_i32_0 : i32
    %c0_i32_1 = arith.constant 0 : i32
    %4 = arith.cmpi slt, %2, %c0_i32_1 : i32
    %c0_i32_2 = arith.constant 0 : i32
    %5 = arith.cmpi slt, %1, %c0_i32_2 : i32
    %6 = arith.xori %4, %5 : i1
    %7 = arith.andi %6, %3 : i1
    %8 = arith.addi %2, %1 : i32
    %9 = arith.select %7, %8, %2 : i32
    %c2_i32_3 = arith.constant 2 : i32
    %10 = arith.muli %c2_i32_3, %arg1 : i32
    %c0_i32_4 = arith.constant 0 : i32
    %11 = arith.subi %c0_i32_4, %10 : i32
    %12 = arith.muli %9, %11 : i32
    %13 = arith.addi %arg1, %12 : i32
    %c0_i32_5 = arith.constant 0 : i32
    %c0_i32_6 = arith.constant 0 : i32
    return %13, %c0_i32_5 : i32, i32
  }
  func.func @transform_4(%arg0: i32, %arg1: i32) -> (i32, i32) {
    %c0_i32 = arith.constant 0 : i32
    %c0_i32_0 = arith.constant 0 : i32
    %c0_i32_1 = arith.constant 0 : i32
    return %c0_i32, %c0_i32_0 : i32, i32
  }
  func.func @transform_5(%arg0: i32, %arg1: i32) -> (i32, i32) {
    %c0_i32 = arith.constant 0 : i32
    %c0_i32_0 = arith.constant 0 : i32
    return %arg0, %c0_i32 : i32, i32
  }
}

</mosaic_0001>

<llo_original>
// kernel: tpu_custom_call.1
$region0: #{tpu_custom_call.1}
  #allocation0 [shape = 'u32[]', space=smem, size = 0x4, offset = 0x4, fixed_abs, tag = 'smem constant byte address 0x4 - core index']
  #allocation1 [shape = 'u32[72,128]{1,0:T(1,128)}', space=vmem, size = 0x9000, scoped, tag = 'internal scratch']
  %s0 = inlined_call_operand.vmem [shape: f32[16,32], index: 0, kind: input, shape index: {}]
  %s1 = inlined_call_operand.vmem [shape: f32[32,128], index: 1, kind: input, shape index: {}]
  %s2 = inlined_call_operand.vmem [shape: f32[1,128], index: 2, kind: input, shape index: {}]
  %s3 = inlined_call_operand.vmem [shape: f32[128,32], index: 3, kind: input, shape index: {}]
  %s4 = inlined_call_operand.vmem [shape: f32[1,32], index: 4, kind: input, shape index: {}]
  %s5 = inlined_call_operand.hbm [shape: f32[16,32], index: 5, kind: output, shape index: {}]
  %s6 = sld [smem:[#allocation0]]
  $region34: #{tpu_custom_call.1} parent=0
    _
  %s8 = ssub.s32 1, %s6
  %s9 = scalar_select 0, %s8, %s6
  $region1: #{tpu_custom_call.1} parent=0
    #allocation2 [shape = 'u8[8192]{0}', space=vmem, size = 0x2000, scoped, tag = 'output window, operand 0, single buffered']
    #allocation3 [shape = 's32[1]{0}', space=sflag, size = 0x4, scoped, tag = 'scoped memory for tpu_custom_call.1']
    %10 = vsyncpa [#allocation3], 0
    // Predicated region
    $region2: #{tpu_custom_call.1} parent=1 // pred_check
      _
    $region3: #{tpu_custom_call.1} parent=1 // pred_check_branch
      %12 = sbr.rel (0) target = $region5
    $region4: #{tpu_custom_call.1} parent=1 // pred_region
      _
    $region5: #{tpu_custom_call.1} parent=1 // pred_fallthru
      _
    // Predicated region
    $region6: #{tpu_custom_call.1} parent=1 // pred_check
      _
    $region7: #{tpu_custom_call.1} parent=1 // pred_check_branch
      %14 = sbr.rel (0) target = $region9
    $region8: #{tpu_custom_call.1} parent=1 // pred_region
      %s15 = ssub.s32 0, 0
      %s16 = ssub.s32 0, 0
      %p17 = scmp.ne.s32.totalorder 0, 0
      %p18 = scmp.lt.s32.totalorder 0, 0
      %p19 = pnand %p18, %p17
      %p20 = pneg %p19
      %s21 = sadd.s32 0, 2
      %s22 = scalar_select %p20, %s21, 0
      %s23 = smul.u32 0, 2
      %s24 = ssub.s32 0, %s23
      %s25 = smul.u32 %s22, %s24
      %s26 = sadd.s32 0, %s25
      %p27 = scmp.lt.s32.totalorder %s26, 0
      %s28 = scalar_select %p27, %s26, 0
      %s29 = smul.addr %s28, 8
      %s30 = scalar_lea.vmem %s1, %s29
      %s31 = ssub.s32 0, 0
      %s32 = ssub.s32 0, 0
      %p33 = scmp.ne.s32.totalorder 0, 0
      %p34 = scmp.lt.s32.totalorder 0, 0
      %p35 = pnand %p34, %p33
      %p36 = pneg %p35
      %s37 = sadd.s32 0, 2
      %s38 = scalar_select %p36, %s37, 0
      %s39 = smul.u32 0, 2
      %s40 = ssub.s32 0, %s39
      %s41 = smul.u32 %s38, %s40
      %s42 = sadd.s32 0, %s41
    $region9: #{tpu_custom_call.1} parent=1 // pred_fallthru
      _
    // Predicated region
    $region10: #{tpu_custom_call.1} parent=1 // pred_check
      _
    $region11: #{tpu_custom_call.1} parent=1 // pred_check_branch
      %44 = sbr.rel (0) target = $region13
    $region12: #{tpu_custom_call.1} parent=1 // pred_region
      %s45 = ssub.s32 0, 0
      %s46 = ssub.s32 0, 0
      %p47 = scmp.ne.s32.totalorder 0, 0
      %p48 = scmp.lt.s32.totalorder 0, 0
      %p49 = pnand %p48, %p47
      %p50 = pneg %p49
      %s51 = sadd.s32 0, 2
      %s52 = scalar_select %p50, %s51, 0
      %s53 = smul.u32 0, 2
      %s54 = ssub.s32 0, %s53
      %s55 = smul.u32 %s52, %s54
      %s56 = sadd.s32 0, %s55
      %p57 = scmp.lt.s32.totalorder %s56, 0
      %s58 = scalar_select %p57, %s56, 0
      %s59 = scalar_lea.vmem %s2, %s58
      %s60 = ssub.s32 0, 0
      %s61 = ssub.s32 0, 0
      %p62 = scmp.ne.s32.totalorder 0, 0
      %p63 = scmp.lt.s32.totalorder 0, 0
      %p64 = pnand %p63, %p62
      %p65 = pneg %p64
      %s66 = sadd.s32 0, 2
      %s67 = scalar_select %p65, %s66, 0
      %s68 = smul.u32 0, 2
      %s69 = ssub.s32 0, %s68
      %s70 = smul.u32 %s67, %s69
      %s71 = sadd.s32 0, %s70
    $region13: #{tpu_custom_call.1} parent=1 // pred_fallthru
      _
    // Predicated region
    $region14: #{tpu_custom_call.1} parent=1 // pred_check
      _
    $region15: #{tpu_custom_call.1} parent=1 // pred_check_branch
      %73 = sbr.rel (0) target = $region17
    $region16: #{tpu_custom_call.1} parent=1 // pred_region
      %s74 = ssub.s32 0, 0
      %s75 = ssub.s32 0, 0
      %p76 = scmp.ne.s32.totalorder 0, 0
      %p77 = scmp.lt.s32.totalorder 0, 0
      %p78 = pnand %p77, %p76
      %p79 = pneg %p78
      %s80 = sadd.s32 0, 2
      %s81 = scalar_select %p79, %s80, 0
      %s82 = smul.u32 0, 2
      %s83 = ssub.s32 0, %s82
      %s84 = smul.u32 %s81, %s83
      %s85 = sadd.s32 0, %s84
      %s86 = smul.u32 16, %s85
      %p87 = scmp.lt.s32.totalorder %s86, 15
      %s88 = scalar_select %p87, %s86, 15
      %s89 = smul.addr %s88, 8
      %s90 = scalar_lea.vmem %s3, %s89
      %s91 = ssub.s32 0, 0
      %s92 = ssub.s32 0, 0
      %p93 = scmp.ne.s32.totalorder 0, 0
      %p94 = scmp.lt.s32.totalorder 0, 0
      %p95 = pnand %p94, %p93
      %p96 = pneg %p95
      %s97 = sadd.s32 0, 2
      %s98 = scalar_select %p96, %s97, 0
      %s99 = smul.u32 0, 2
      %s100 = ssub.s32 0, %s99
      %s101 = smul.u32 %s98, %s100
      %s102 = sadd.s32 0, %s101
      %s103 = smul.u32 16, %s102
    $region17: #{tpu_custom_call.1} parent=1 // pred_fallthru
      _
    // Predicated region
    $region18: #{tpu_custom_call.1} parent=1 // pred_check
      _
    $region19: #{tpu_custom_call.1} parent=1 // pred_check_branch
      %105 = sbr.rel (0) target = $region21
    $region20: #{tpu_custom_call.1} parent=1 // pred_region
      _
    $region21: #{tpu_custom_call.1} parent=1 // pred_fallthru
      _
    %s106 = ssub.s32 0, 0
    %s107 = ssub.s32 0, 0
    %p108 = scmp.ne.s32.totalorder 0, 0
    %p109 = scmp.lt.s32.totalorder 0, 0
    %p110 = pnand %p109, %p108
    %p111 = pneg %p110
    %s112 = sadd.s32 0, 2
    %s113 = scalar_select %p111, %s112, 0
    %s114 = smul.u32 0, 2
    %s115 = ssub.s32 0, %s114
    %s116 = smul.u32 %s113, %s115
    %s117 = sadd.s32 0, %s116
    %p118 = scmp.lt.s32.totalorder %s117, 0
    %s119 = scalar_select %p118, %s117, 0
    %s120 = smul.addr %s119, 8
    %s121 = scalar_lea.vmem %s1, %s120
    %s122 = ssub.s32 0, 0
    %s123 = ssub.s32 0, 0
    %p124 = scmp.ne.s32.totalorder 0, 0
    %p125 = scmp.lt.s32.totalorder 0, 0
    %p126 = pnand %p125, %p124
    %p127 = pneg %p126
    %s128 = sadd.s32 0, 2
    %s129 = scalar_select %p127, %s128, 0
    %s130 = smul.u32 0, 2
    %s131 = ssub.s32 0, %s130
    %s132 = smul.u32 %s129, %s131
    %s133 = sadd.s32 0, %s132
    %p134 = scmp.lt.s32.totalorder %s133, 0
    %s135 = scalar_select %p134, %s133, 0
    %s136 = scalar_lea.vmem %s2, %s135
    %s137 = ssub.s32 0, 0
    %s138 = ssub.s32 0, 0
    %p139 = scmp.ne.s32.totalorder 0, 0
    %p140 = scmp.lt.s32.totalorder 0, 0
    %p141 = pnand %p140, %p139
    %p142 = pneg %p141
    %s143 = sadd.s32 0, 2
    %s144 = scalar_select %p142, %s143, 0
    %s145 = smul.u32 0, 2
    %s146 = ssub.s32 0, %s145
    %s147 = smul.u32 %s144, %s146
    %s148 = sadd.s32 0, %s147
    %s149 = smul.u32 16, %s148
    %p150 = scmp.lt.s32.totalorder %s149, 15
    %s151 = scalar_select %p150, %s149, 15
    %s152 = smul.addr %s151, 8
    %s153 = scalar_lea.vmem %s3, %s152
    %s154 = ssub.s32 0, 0
    %s155 = ssub.s32 0, 0
    %p156 = scmp.ne.s32.totalorder 0, 0
    %p157 = scmp.lt.s32.totalorder 0, 0
    %p158 = pnand %p157, %p156
    %p159 = pneg %p158
    %s160 = sadd.s32 0, 2
    %s161 = scalar_select %p159, %s160, 0
    %s162 = smul.u32 0, 2
    %s163 = ssub.s32 0, %s162
    %s164 = smul.u32 %s161, %s163
    %s165 = sadd.s32 0, %s164
    %p166 = scmp.lt.s32.totalorder %s165, 0
    %s167 = scalar_select %p166, %s165, 0
    %s168 = smul.addr %s167, 8
    %s169 = scalar_lea.vmem %s1, %s168
    %s170 = ssub.s32 0, 0
    %s171 = ssub.s32 0, 0
    %p172 = scmp.ne.s32.totalorder 0, 0
    %p173 = scmp.lt.s32.totalorder 0, 0
    %p174 = pnand %p173, %p172
    %p175 = pneg %p174
    %s176 = sadd.s32 0, 2
    %s177 = scalar_select %p175, %s176, 0
    %s178 = smul.u32 0, 2
    %s179 = ssub.s32 0, %s178
    %s180 = smul.u32 %s177, %s179
    %s181 = sadd.s32 0, %s180
    %s182 = ssub.s32 0, 0
    %s183 = ssub.s32 0, 0
    %p184 = scmp.ne.s32.totalorder 0, 0
    %p185 = scmp.lt.s32.totalorder 0, 0
    %p186 = pnand %p185, %p184
    %p187 = pneg %p186
    %s188 = sadd.s32 0, 2
    %s189 = scalar_select %p187, %s188, 0
    %s190 = smul.u32 0, 2
    %s191 = ssub.s32 0, %s190
    %s192 = smul.u32 %s189, %s191
    %s193 = sadd.s32 0, %s192
    %p194 = scmp.lt.s32.totalorder %s193, 0
    %s195 = scalar_select %p194, %s193, 0
    %s196 = scalar_lea.vmem %s2, %s195
    %s197 = ssub.s32 0, 0
    %s198 = ssub.s32 0, 0
    %p199 = scmp.ne.s32.totalorder 0, 0
    %p200 = scmp.lt.s32.totalorder 0, 0
    %p201 = pnand %p200, %p199
    %p202 = pneg %p201
    %s203 = sadd.s32 0, 2
    %s204 = scalar_select %p202, %s203, 0
    %s205 = smul.u32 0, 2
    %s206 = ssub.s32 0, %s205
    %s207 = smul.u32 %s204, %s206
    %s208 = sadd.s32 0, %s207
    %s209 = ssub.s32 0, 0
    %s210 = ssub.s32 0, 0
    %p211 = scmp.ne.s32.totalorder 0, 0
    %p212 = scmp.lt.s32.totalorder 0, 0
    %p213 = pnand %p212, %p211
    %p214 = pneg %p213
    %s215 = sadd.s32 0, 2
    %s216 = scalar_select %p214, %s215, 0
    %s217 = smul.u32 0, 2
    %s218 = ssub.s32 0, %s217
    %s219 = smul.u32 %s216, %s218
    %s220 = sadd.s32 0, %s219
    %s221 = smul.u32 16, %s220
    %p222 = scmp.lt.s32.totalorder %s221, 15
    %s223 = scalar_select %p222, %s221, 15
    %s224 = smul.addr %s223, 8
    %s225 = scalar_lea.vmem %s3, %s224
    %s226 = ssub.s32 0, 0
    %s227 = ssub.s32 0, 0
    %p228 = scmp.ne.s32.totalorder 0, 0
    %p229 = scmp.lt.s32.totalorder 0, 0
    %p230 = pnand %p229, %p228
    %p231 = pneg %p230
    %s232 = sadd.s32 0, 2
    %s233 = scalar_select %p231, %s232, 0
    %s234 = smul.u32 0, 2
    %s235 = ssub.s32 0, %s234
    %s236 = smul.u32 %s233, %s235
    %s237 = sadd.s32 0, %s236
    %s238 = smul.u32 16, %s237
    %p239 = scmp.eq.s32.totalorder 0, 0
    // Predicated region
    $region22: #{tpu_custom_call.1} parent=1 // pred_check
      %p240 = pneg %p239
    $region23: #{tpu_custom_call.1} parent=1 // pred_check_branch
      %242 = sbr.rel (%p240) target = $region25
    $region24: #{tpu_custom_call.1} parent=1 // pred_region
      %v243 = vld [vmem:[%s4] sm:$0x1]
      %v245 = vperm.slane %v243, 0
      %vm247 = vcmask 261120
      %248 = vst.msk [vmem:[#allocation2] sm:$0xff] %vm247, %v245
      %249 = vst.msk [vmem:[#allocation2 + $0x8] sm:$0xff] %vm247, %v245
    $region25: #{tpu_custom_call.1} parent=1 // pred_fallthru
      _
    %v250 = vld [vmem:[%s0] sm:$0xff]
    %v251 = vld [vmem:[%s0 + $0x8] sm:$0xff]
    %v252 = vld [vmem:[%s169] sm:$0xff]
    %v253 = vld [vmem:[%s169 + $0x8] sm:$0xff]
    %v254 = vld [vmem:[%s169 + $0x10] sm:$0xff]
    %v255 = vld [vmem:[%s169 + $0x18] sm:$0xff]
    %v256 = vld [vmem:[%s196] sm:$0x1]
    %v258 = vperm.slane %v256, 0
    %vm260 = vcmask 261120
    %v262 = vsel %vm260, %v250, 0
    %v265 = vsel %vm260, %v251, 0
    %267 = vmatpush.msra.mxu0 0.0
    %268 = vmatpush.msra.mxu0 0.0
    %269 = vmatpush.msra.mxu0 0.0
    %270 = vmatpush.msra.mxu0 0.0
    %271 = vmatpush.msra.mxu0 0.0
    %272 = vmatpush.msra.mxu0 0.0
    %273 = vmatpush.msra.mxu0 0.0
    %274 = vmatpush.msra.mxu0 0.0
    %275 = vmatpush.msra.mxu0 0.0
    %276 = vmatpush.msra.mxu0 0.0
    %277 = vmatpush.msra.mxu0 0.0
    %278 = vmatpush.msra.mxu0 0.0
    %279 = vmatpush.msra.mxu0 %v255
    %280 = vmatpush.msra.mxu0 %v254
    %281 = vmatpush.msra.mxu0 %v253
    %282 = vmatpush.msra.mxu0 %v252
    %283 = vmatmul.f32.gmra.mxu0 %v262
    %v284 = vpop.f32.mrf.mxu0
    %v285 = vadd.f32 %v258, %v284
    %286 = vmatmul.f32.gmra.mxu0 %v265
    %v287 = vpop.f32.mrf.mxu0
    %v288 = vadd.f32 %v258, %v287
    %289 = vdwg.mxu0
    %v290 = vmul.f32 %v285, 0.5
    %v291 = vmul.f32 %v288, 0.5
    %v292 = vmul.f32 %v285, 0.70710677
    %v293 = vmul.f32 %v288, 0.70710677
    %v294 = vmul.f32 %v292, %v292
    %v295 = vmin.f32 16.0, %v294
    %v296 = vmul.f32 %v295, 2.1237322e-06
    %v297 = vadd.f32 %v296, 0.00028619796
    %v298 = vmul.f32 %v295, %v297
    %v299 = vadd.f32 %v298, 0.0036580483
    %v300 = vmul.f32 %v295, %v299
    %v301 = vadd.f32 %v300, 0.05243302
    %v302 = vmul.f32 %v295, %v301
    %v303 = vadd.f32 %v302, 0.18741608
    %v304 = vmul.f32 %v295, %v303
    %v305 = vadd.f32 %v304, 1.1283791
    %v306 = vmul.f32 %v292, %v305
    %v307 = vmul.f32 %v295, 3.8918573e-05
    %v308 = vadd.f32 %v307, 0.001143296
    %v309 = vmul.f32 %v295, %v308
    %v310 = vadd.f32 %v309, 0.014752088
    %v311 = vmul.f32 %v295, %v310
    %v312 = vadd.f32 %v311, 0.112945676
    %v313 = vmul.f32 %v295, %v312
    %v314 = vadd.f32 %v313, 0.4994258
    %v315 = vmul.f32 %v295, %v314
    %v316 = vadd.f32 %v315, 1.0
    %v317 = vrcp.pop %v316
    %v318 = vmul.f32 %v316, %v317
    %v319 = vsub.f32 1.0, %v318
    %v320 = vmul.f32 %v317, %v319
    %v321 = vadd.f32 %v317, %v320
    %vm322 = vweird.f32 %v316
    %vm323 = vweird.f32 %v317
    %vm324 = vmor %vm322, %vm323
    %v325 = vsel %vm324, %v317, %v321
    %v326 = vand.u32 2147483647, %v316
    %vm327 = vcmp.eq.f32.partialorder %v326, 8.507059e+37
    %v328 = vand.u32 %v316, 2147483648
    %v329 = vor.u32 1.1754944e-38, %v328
    %v330 = vsel %vm327, %v329, %v325
    %v331 = vmul.f32 %v306, %v330
    %v332 = vmin.f32 %v331, 1.0
    %v333 = vmax.f32 %v332, -1.0
    %v334 = vmul.f32 %v293, %v293
    %v335 = vmin.f32 16.0, %v334
    %v336 = vmul.f32 %v335, 2.1237322e-06
    %v337 = vadd.f32 %v336, 0.00028619796
    %v338 = vmul.f32 %v335, %v337
    %v339 = vadd.f32 %v338, 0.0036580483
    %v340 = vmul.f32 %v335, %v339
    %v341 = vadd.f32 %v340, 0.05243302
    %v342 = vmul.f32 %v335, %v341
    %v343 = vadd.f32 %v342, 0.18741608
    %v344 = vmul.f32 %v335, %v343
    %v345 = vadd.f32 %v344, 1.1283791
    %v346 = vmul.f32 %v293, %v345
    %v347 = vmul.f32 %v335, 3.8918573e-05
    %v348 = vadd.f32 %v347, 0.001143296
    %v349 = vmul.f32 %v335, %v348
    %v350 = vadd.f32 %v349, 0.014752088
    %v351 = vmul.f32 %v335, %v350
    %v352 = vadd.f32 %v351, 0.112945676
    %v353 = vmul.f32 %v335, %v352
    %v354 = vadd.f32 %v353, 0.4994258
    %v355 = vmul.f32 %v335, %v354
    %v356 = vadd.f32 %v355, 1.0
    %v357 = vrcp.pop %v356
    %v358 = vmul.f32 %v356, %v357
    %v359 = vsub.f32 1.0, %v358
    %v360 = vmul.f32 %v357, %v359
    %v361 = vadd.f32 %v357, %v360
    %vm362 = vweird.f32 %v356
    %vm363 = vweird.f32 %v357
    %vm364 = vmor %vm362, %vm363
    %v365 = vsel %vm364, %v357, %v361
    %v366 = vand.u32 2147483647, %v356
    %vm367 = vcmp.eq.f32.partialorder %v366, 8.507059e+37
    %v368 = vand.u32 %v356, 2147483648
    %v369 = vor.u32 1.1754944e-38, %v368
    %v370 = vsel %vm367, %v369, %v365
    %v371 = vmul.f32 %v346, %v370
    %v372 = vmin.f32 %v371, 1.0
    %v373 = vmax.f32 %v372, -1.0
    %v374 = vadd.f32 %v333, 1.0
    %v375 = vadd.f32 %v373, 1.0
    %v376 = vmul.f32 %v290, %v374
    %v377 = vmul.f32 %v291, %v375
    %v378 = vld [vmem:[#allocation2] sm:$0xff]
    %v379 = vld [vmem:[#allocation2 + $0x8] sm:$0xff]
    %v380 = vld [vmem:[%s225] sm:$0xff]
    %v381 = vld [vmem:[%s225 + $0x8] sm:$0xff]
    %v382 = vld [vmem:[%s225 + $0x10] sm:$0xff]
    %v383 = vld [vmem:[%s225 + $0x18] sm:$0xff]
    %v384 = vld [vmem:[%s225 + $0x20] sm:$0xff]
    %v385 = vld [vmem:[%s225 + $0x28] sm:$0xff]
    %v386 = vld [vmem:[%s225 + $0x30] sm:$0xff]
    %v387 = vld [vmem:[%s225 + $0x38] sm:$0xff]
    %v388 = vld [vmem:[%s225 + $0x40] sm:$0xff]
    %v389 = vld [vmem:[%s225 + $0x48] sm:$0xff]
    %v390 = vld [vmem:[%s225 + $0x50] sm:$0xff]
    %v391 = vld [vmem:[%s225 + $0x58] sm:$0xff]
    %v392 = vld [vmem:[%s225 + $0x60] sm:$0xff]
    %v393 = vld [vmem:[%s225 + $0x68] sm:$0xff]
    %v394 = vld [vmem:[%s225 + $0x70] sm:$0xff]
    %v395 = vld [vmem:[%s225 + $0x78] sm:$0xff]
    %396 = vmatpush.msra.mxu0 %v395
    %397 = vmatpush.msra.mxu0 %v394
    %398 = vmatpush.msra.mxu0 %v393
    %399 = vmatpush.msra.mxu0 %v392
    %400 = vmatpush.msra.mxu0 %v391
    %401 = vmatpush.msra.mxu0 %v390
    %402 = vmatpush.msra.mxu0 %v389
    %403 = vmatpush.msra.mxu0 %v388
    %404 = vmatpush.msra.mxu0 %v387
    %405 = vmatpush.msra.mxu0 %v386
    %406 = vmatpush.msra.mxu0 %v385
    %407 = vmatpush.msra.mxu0 %v384
    %408 = vmatpush.msra.mxu0 %v383
    %409 = vmatpush.msra.mxu0 %v382
    %410 = vmatpush.msra.mxu0 %v381
    %411 = vmatpush.msra.mxu0 %v380
    %412 = vmatmul.f32.gmra.mxu0 %v376
    %v413 = vpop.f32.mrf.mxu0
    %v414 = vadd.f32 0.0, %v413
    %415 = vmatmul.f32.gmra.mxu0 %v377
    %v416 = vpop.f32.mrf.mxu0
    %v417 = vadd.f32 0.0, %v416
    %418 = vdwg.mxu0
    %v419 = vadd.f32 %v378, %v414
    %v420 = vadd.f32 %v379, %v417
    %421 = vst.msk [vmem:[#allocation2] sm:$0xff] %vm260, %v419
    %422 = vst.msk [vmem:[#allocation2 + $0x8] sm:$0xff] %vm260, %v420
    // Predicated region
    $region26: #{tpu_custom_call.1} parent=1 // pred_check
      _
    $region27: #{tpu_custom_call.1} parent=1 // pred_check_branch
      %424 = sbr.rel (0) target = $region29
    $region28: #{tpu_custom_call.1} parent=1 // pred_region
      %426 = vsyncadd [#allocation3], 0
      %s427 = sshll.u32 [#allocation2], 4
      %s428 = int_to_ptr.vmem [resolvable:$true] %s427
      %s429 = sshll.u32 %s5, 4
      %s430 = int_to_ptr.hbm [resolvable:$true] %s429
      %435 = dma.vmem_to_hbm [thread:$0]  %s428, 256, %s430, [#allocation3], 128, 128, 8
    $region29: #{tpu_custom_call.1} parent=1 // pred_fallthru
      _
    // Predicated region
    $region30: #{tpu_custom_call.1} parent=1 // pred_check
      _
    $region31: #{tpu_custom_call.1} parent=1 // pred_check_branch
      %437 = sbr.rel (0) target = $region33
    $region32: #{tpu_custom_call.1} parent=1 // pred_region
      %439 = dma.done [#allocation3], 256
    $region33: #{tpu_custom_call.1} parent=1 // pred_fallthru
      _
    %440 = vsyncpa [#allocation3], 1

</llo_original>
